<compile_context>
chip_gen: v7x
topology: tpu7x:2x2x1
jax: 0.10.0
libtpu: 0.0.40
codegen_flags: <defaults>
</compile_context>

<pallas_src>
import functools

import jax
import jax.numpy as jnp
from jax import lax
from jax.experimental import pallas as pl
from jax.experimental.pallas import tpu as pltpu

# ----------------------------- configuration --------------------------------
B = 2
C_CV = 32            # cv_channels
C_SEM = 32           # in_sem_channels
C_OUT = 32           # out_channels
NUM_GROUPS = 32      # GroupNorm(32, out_channels)  -> per-channel normalization
GN_EPS = 1e-5
assert NUM_GROUPS == C_OUT   # kernel implements the default per-channel GN

D_CV, H_CV, W_CV = 8, 8, 16          # stereo cost-volume spatial dims
NSRC3 = D_CV * H_CV * W_CV           # 1024
H_SEM, W_SEM = 16, 24                # semantic feature map dims
NSRC2 = H_SEM * W_SEM                # 384
ZV, YV, XV = 8, 8, 16                # voxel grid (n1, n2, n3); n1 pooled by 4
NVOX = ZV * YV * XV                  # 1024
PLANE = YV * XV                      # 128

PAD_H, PAD_W = 96, 320               # img_metas['pad_shape']
DEPTH_MIN, DEPTH_MAX = 2.0, 40.0     # depth_cfg

C_CAT = C_CV + C_SEM                 # concat of stereo voxel + 2D voxel = 64
M_EXT = 48                           # stereo rows (32) + softmax row (1), padded up
NZOUT = (ZV // 4) * PLANE            # pooled output spatial size = 256

_CONV_OFFSETS = [(dz, dy, dx) for dz in (-1, 0, 1)
                 for dy in (-1, 0, 1) for dx in (-1, 0, 1)]


# ===================== roll-convention probe (tiny kernel) ===================
def _roll_probe_kernel(x_ref, o_ref):
    o_ref[...] = pltpu.roll(x_ref[...], 1, axis=1)


def _roll_matches_jnp():
    """Detect once whether pltpu.roll follows jnp.roll's shift convention."""
    x = jnp.tile(jnp.arange(128, dtype=jnp.float32)[None, :], (8, 1))
    y = pl.pallas_call(
        _roll_probe_kernel,
        out_shape=jax.ShapeDtypeStruct((8, 128), jnp.float32))(x)
    # jnp.roll(x, 1, axis=1)[0, 0] == 127; the opposite convention gives 1.
    return bool(jax.device_get(y)[0, 0] == 127.0)


# ============================ fused Pallas kernel ============================
# grid_sample-as-matmul + masking + attention + concat + Conv3d(3^3) + GN + ReLU
# + AvgPool(4,1,1) -- all in VMEM, one HBM read of inputs, one HBM write of output.
def _frustum_fused_kernel(roll_is_jnp,
                          stereo_ref, sem_ref, w3_ref, w2_ref,
                          valid_ref, valid2d_ref, w27_ref, cmask_ref,
                          gamma_ref, beta_ref, out_ref):
    valid = valid_ref[0]                                     # [1, NVOX] f32
    valid2d = valid2d_ref[0]                                 # [1, NVOX] f32

    # ---- grid_sample as bf16 MXU matmuls (stereo + softmax merged in one GEMM) ----
    big = jnp.dot(stereo_ref[0], w3_ref[0],
                  preferred_element_type=jnp.float32)        # [M_EXT, NVOX] f32
    big = big * valid
    vox = big[0:C_CV, :]                                     # [32, NVOX]
    disp = big[C_CV:C_CV + 1, :]                             # [1, NVOX]  (softmax row)
    vox2d = (jnp.dot(sem_ref[0], w2_ref[0],
                     preferred_element_type=jnp.float32)
             * valid2d * disp)                               # [32, NVOX]

    feat = jnp.concatenate([vox, vox2d], axis=0)             # [C_CAT, NVOX] f32

    # ---- Conv3d 3x3x3 / pad 1 as 27 lane-rolled matmuls (no im2col) ----
    acc = jnp.zeros((C_OUT, NVOX), jnp.float32)
    for k, (dz, dy, dx) in enumerate(_CONV_OFFSETS):
        off = dz * PLANE + dy * XV + dx
        if off == 0:
            shifted = feat
        else:
            # want shifted[:, v] == feat[:, (v + off) % NVOX]
            amt = (-off) % NVOX if roll_is_jnp else off % NVOX
            shifted = pltpu.roll(feat, amt, axis=1)
        part = jnp.dot(w27_ref[k], shifted.astype(jnp.bfloat16),
                       preferred_element_type=jnp.float32)   # [C_OUT, NVOX]
        # per-voxel boundary mask kills wrapped / out-of-bounds neighbors
        acc = acc + part * cmask_ref[k:k + 1, :]

    # ---- GroupNorm(32, 32) == per-channel, one-pass stats + affine + ReLU ----
    inv_n = 1.0 / NVOX
    mean = jnp.sum(acc, axis=1, keepdims=True) * inv_n
    ex2 = jnp.sum(acc * acc, axis=1, keepdims=True) * inv_n
    var = ex2 - mean * mean
    y = (acc - mean) * lax.rsqrt(var + GN_EPS)
    y = y * gamma_ref[...] + beta_ref[...]
    y = jnp.maximum(y, 0.0)

    # ---- AvgPool3d((4,1,1)): flat order is z-major, 128 lanes per z-plane ----
    for zb in range(ZV // 4):
        base = 4 * zb * PLANE
        s = (y[:, base:base + PLANE]
             + y[:, base + PLANE:base + 2 * PLANE]
             + y[:, base + 2 * PLANE:base + 3 * PLANE]
             + y[:, base + 3 * PLANE:base + 4 * PLANE])
        out_ref[0, :, zb * PLANE:(zb + 1) * PLANE] = s * 0.25


def fused_frustum_pallas(stereo_ext, sem_flat, w3, w2, valid, valid2d,
                         w27, cmask, gamma, beta, *, roll_is_jnp):
    kernel = functools.partial(_frustum_fused_kernel, roll_is_jnp)
    out_flat = pl.pallas_call(
        kernel,
        out_shape=jax.ShapeDtypeStruct((B, C_OUT, NZOUT), jnp.float32),
        grid_spec=pltpu.PrefetchScalarGridSpec(
            num_scalar_prefetch=0,
            grid=(B,),
            in_specs=[
                pl.BlockSpec((1, M_EXT, NSRC3), lambda b: (b, 0, 0)),   # stereo+softmax
                pl.BlockSpec((1, C_SEM, NSRC2), lambda b: (b, 0, 0)),   # semantic feat
                pl.BlockSpec((1, NSRC3, NVOX), lambda b: (b, 0, 0)),    # w3 (bf16)
                pl.BlockSpec((1, NSRC2, NVOX), lambda b: (b, 0, 0)),    # w2 (bf16)
                pl.BlockSpec((1, 1, NVOX), lambda b: (b, 0, 0)),        # valid
                pl.BlockSpec((1, 1, NVOX), lambda b: (b, 0, 0)),        # valid2d
                pl.BlockSpec((27, C_OUT, C_CAT), lambda b: (0, 0, 0)),  # conv weights
                pl.BlockSpec((27, NVOX), lambda b: (0, 0)),             # conv masks
                pl.BlockSpec((C_OUT, 1), lambda b: (0, 0)),             # gamma
                pl.BlockSpec((C_OUT, 1), lambda b: (0, 0)),             # beta
            ],
            out_specs=pl.BlockSpec((1, C_OUT, NZOUT), lambda b: (b, 0, 0)),
        ),
        compiler_params=pltpu.CompilerParams(
            dimension_semantics=("parallel",),      # v7x: one batch per TensorCore
            vmem_limit_bytes=32 * 1024 * 1024),
    )(stereo_ext, sem_flat, w3, w2, valid, valid2d, w27, cmask, gamma, beta)
    return out_flat.reshape(B, C_OUT, ZV // 4, YV, XV)


# ================================ JAX glue ===================================
def project_to_norm_coords(coordinates_3d, cam2img):
    """pseudo-lidar voxel centers -> normalized (x, y, z) grid_sample coords."""
    c3d = coordinates_3d.reshape(-1, 3)                        # [NVOX, 3]
    xs, ys, zs = c3d[:, 0], c3d[:, 1], c3d[:, 2]
    rect = jnp.stack([-ys, -zs, xs], axis=-1)                  # rect-cam coords
    hom = jnp.concatenate(
        [rect, jnp.ones((rect.shape[0], 1), rect.dtype)], axis=1)
    P = cam2img[:, :3, :]                                      # [B, 3, 4]
    pts = jnp.einsum('nk,bjk->bnj', hom, P,
                     precision=lax.Precision.HIGHEST)          # [B, NVOX, 3]
    u = pts[..., 0] / pts[..., 2]
    v = pts[..., 1] / pts[..., 2]
    depth = jnp.broadcast_to(rect[:, 2][None, :], u.shape)
    coord_img = jnp.stack([u, v, depth], axis=-1)              # [B, NVOX, 3]

    valid2d = (u >= 0) & (u <= PAD_W) & (v >= 0) & (v <= PAD_H)
    offset = jnp.array([0.0, 0.0, DEPTH_MIN], jnp.float32)
    scale = jnp.array([PAD_W - 1.0, PAD_H - 1.0, DEPTH_MAX - DEPTH_MIN],
                      jnp.float32)
    norm = (coord_img - offset) / scale * 2.0 - 1.0
    valids = valid2d & (norm[..., 2] >= -1.0) & (norm[..., 2] <= 1.0)
    return norm, valids.astype(jnp.float32), valid2d.astype(jnp.float32)


def _axis_interp_weights(coord, n):
    """Linear-interp weight of each of the n source samples along one axis, per
    query coordinate.  Out-of-range taps contribute nothing (zeros padding)."""
    c0 = jnp.floor(coord)
    f = coord - c0
    idx = jnp.arange(n, dtype=coord.dtype)[:, None]            # [n, 1]
    return (jnp.where(idx == c0[None, :], 1.0 - f[None, :], 0.0)
            + jnp.where(idx == c0[None, :] + 1.0, f[None, :], 0.0))


def build_interp_matrix(grid, src_dhw):
    """Dense matrix equivalent of F.grid_sample(mode='bilinear', padding_mode=
    'zeros', align_corners=True).  grid: [NQ, 3] normalized (x, y, z).
    Returns [D*H*W, NQ].  Built scatter-free from separable per-axis weights."""
    D, H, W = src_dhw
    ix = (grid[:, 0] + 1.0) * 0.5 * (W - 1)
    iy = (grid[:, 1] + 1.0) * 0.5 * (H - 1)
    iz = (grid[:, 2] + 1.0) * 0.5 * (D - 1)
    wx = _axis_interp_weights(ix, W)                           # [W, NQ]
    wy = _axis_interp_weights(iy, H)                           # [H, NQ]
    wz = _axis_interp_weights(iz, D)                           # [D, NQ]
    mat = wz[:, None, None, :] * wy[None, :, None, :] * wx[None, None, :, :]
    return mat.reshape(D * H * W, grid.shape[0])


def build_conv_masks():
    """[27, NVOX] boundary masks (1 where the 3x3x3 neighbor is in-bounds)."""
    v = jnp.arange(NVOX)
    z = v // PLANE
    y = (v // XV) % YV
    x = v % XV
    masks = []
    for dz, dy, dx in _CONV_OFFSETS:
        m = ((z + dz >= 0) & (z + dz < ZV)
             & (y + dy >= 0) & (y + dy < YV)
             & (x + dx >= 0) & (x + dx < XV))
        masks.append(m.astype(jnp.float32))
    return jnp.stack(masks)


def frustum_to_voxel_forward(stereo_feat, stereo_feat_softmax, cur_sem_feats,
                             cam2img, coordinates_3d, params, *, roll_is_jnp):
    w27, gamma, beta = params
    norm, valids, valids2d = project_to_norm_coords(coordinates_3d, cam2img)

    # scatter-free interpolation matrices; bf16 MXU operands (halves DMA payload)
    w3 = jax.vmap(lambda g: build_interp_matrix(g, (D_CV, H_CV, W_CV)))(norm)
    norm2d = norm.at[..., 2].set(0.0)                          # z -> 0 (single plane)
    w2 = jax.vmap(lambda g: build_interp_matrix(g, (1, H_SEM, W_SEM)))(norm2d)
    w3 = w3.astype(jnp.bfloat16)
    w2 = w2.astype(jnp.bfloat16)

    stereo_flat = stereo_feat.reshape(B, C_CV, NSRC3)
    sm_flat = stereo_feat_softmax.reshape(B, 1, NSRC3)
    # merge the softmax row into the stereo GEMM; pad M to a clean sublane multiple
    stereo_ext = jnp.concatenate(
        [stereo_flat, sm_flat,
         jnp.zeros((B, M_EXT - C_CV - 1, NSRC3), stereo_flat.dtype)],
        axis=1).astype(jnp.bfloat16)                           # [B, M_EXT, NSRC3]
    sem_flat = cur_sem_feats.reshape(B, C_SEM, NSRC2).astype(jnp.bfloat16)

    cmask = build_conv_masks()

    return fused_frustum_pallas(
        stereo_ext, sem_flat, w3, w2,
        valids[:, None, :], valids2d[:, None, :],
        w27, cmask, gamma, beta, roll_is_jnp=roll_is_jnp)


def init_params(key):
    # Conv3d init: normal(0, sqrt(2 / (kD*kH*kW*Cout))), bias=False; GN affine.
    n = 3 * 3 * 3 * C_OUT
    std = (2.0 / n) ** 0.5
    w = jax.random.normal(key, (C_OUT, C_CAT, 3, 3, 3), jnp.float32) * std
    # [27, C_OUT, C_CAT] in (dz, dy, dx) offset order; bf16 MXU operand
    w27 = jnp.transpose(w, (2, 3, 4, 0, 1)).reshape(27, C_OUT, C_CAT)
    w27 = w27.astype(jnp.bfloat16)
    gamma = jnp.ones((C_OUT, 1), jnp.float32)
    beta = jnp.zeros((C_OUT, 1), jnp.float32)
    return w, w27, gamma, beta


# ============================ pure-JAX reference =============================
def _grid_sample_ref(src, grid):
    """src: [C, D, H, W]; grid: [N, 3] normalized (x, y, z).  Trilinear,
    padding_mode='zeros', align_corners=True (matches F.grid_sample)."""
    C, D, H, W = src.shape
    ix = (grid[:, 0] + 1.0) * 0.5 * (W - 1)
    iy = (grid[:, 1] + 1.0) * 0.5 * (H - 1)
    iz = (grid[:, 2] + 1.0) * 0.5 * (D - 1)
    x0, y0, z0 = jnp.floor(ix), jnp.floor(iy), jnp.floor(iz)
    fx, fy, fz = ix - x0, iy - y0, iz - z0
    out = jnp.zeros((C, grid.shape[0]), jnp.float32)
    for cz in (0, 1):
        wz = fz if cz else 1.0 - fz
        zi = z0 + cz
        for cy in (0, 1):
            wy = fy if cy else 1.0 - fy
            yi = y0 + cy
            for cx in (0, 1):
                wx = fx if cx else 1.0 - fx
                xi = x0 + cx
                w = wz * wy * wx
                inb = ((xi >= 0) & (xi <= W - 1) & (yi >= 0) & (yi <= H - 1)
                       & (zi >= 0) & (zi <= D - 1))
                vals = src[:,
                           jnp.clip(zi, 0, D - 1).astype(jnp.int32),
                           jnp.clip(yi, 0, H - 1).astype(jnp.int32),
                           jnp.clip(xi, 0, W - 1).astype(jnp.int32)]
                out = out + jnp.where(inb, w, 0.0)[None, :] * vals
    return out


def reference_forward(stereo_feat, stereo_feat_softmax, cur_sem_feats,
                      cam2img, coordinates_3d, conv_w, gamma, beta):
    norm, valids, valids2d = project_to_norm_coords(coordinates_3d, cam2img)
    norm2d = norm.at[..., 2].set(0.0)
    vox = jax.vmap(_grid_sample_ref)(stereo_feat, norm) * valids[:, None]
    disp = (jax.vmap(_grid_sample_ref)(stereo_feat_softmax, norm)
            * valids[:, None])
    sem5d = cur_sem_feats[:, :, None, :, :]
    vox2d = (jax.vmap(_grid_sample_ref)(sem5d, norm2d)
             * valids2d[:, None] * disp)
    x = jnp.concatenate([vox, vox2d], axis=1).reshape(B, C_CAT, ZV, YV, XV)
    y = lax.conv_general_dilated(
        x, conv_w, window_strides=(1, 1, 1), padding=((1, 1),) * 3,
        dimension_numbers=('NCDHW', 'OIDHW', 'NCDHW'),
        precision=lax.Precision.HIGHEST)
    yg = y.reshape(B, NUM_GROUPS, -1)
    mean = yg.mean(-1, keepdims=True)
    var = ((yg - mean) ** 2).mean(-1, keepdims=True)
    yn = ((yg - mean) / jnp.sqrt(var + GN_EPS)).reshape(y.shape)
    yn = yn * gamma.reshape(1, C_OUT, 1, 1, 1) + beta.reshape(1, C_OUT, 1, 1, 1)
    yn = jnp.maximum(yn, 0.0)
    return yn.reshape(B, C_OUT, ZV // 4, 4, YV, XV).mean(axis=3)


# =================================== main ====================================
if __name__ == "__main__":
    key = jax.random.PRNGKey(0)
    k1, k2, k3, k4 = jax.random.split(key, 4)
    stereo_feat = jax.random.normal(k1, (B, C_CV, D_CV, H_CV, W_CV),
                                    jnp.float32)
    stereo_feat_softmax = jax.nn.sigmoid(
        jax.random.normal(k2, (B, 1, D_CV, H_CV, W_CV), jnp.float32))
    cur_sem_feats = jax.random.normal(k3, (B, C_SEM, H_SEM, W_SEM),
                                      jnp.float32)

    # voxel centers in pseudo-lidar coords (x forward, y left, z up)
    xs = jnp.linspace(3.0, 38.0, XV)
    ys = jnp.linspace(-8.0, 8.0, YV)
    zs = jnp.linspace(-1.0, 3.0, ZV)
    zz, yy, xx = jnp.meshgrid(zs, ys, xs, indexing='ij')
    coordinates_3d = jnp.stack([xx, yy, zz], axis=-1)          # [ZV, YV, XV, 3]

    def make_cam(fx, fy, cx, cy):
        return jnp.array([[fx, 0., cx, 0.],
                          [0., fy, cy, 0.],
                          [0., 0., 1., 0.],
                          [0., 0., 0., 1.]], jnp.float32)

    cam2img = jnp.stack([make_cam(100., 100., PAD_W / 2, PAD_H / 2),
                         make_cam(110., 105., PAD_W / 2 + 4, PAD_H / 2 - 2)])

    conv_w, w27, gamma, beta = init_params(k4)

    roll_is_jnp = _roll_matches_jnp()

    fwd = jax.jit(frustum_to_voxel_forward, static_argnames=("roll_is_jnp",))
    out = fwd(stereo_feat, stereo_feat_softmax, cur_sem_feats, cam2img,
              coordinates_3d, (w27, gamma, beta), roll_is_jnp=roll_is_jnp)
    out = jax.block_until_ready(out)
    assert out.shape == (B, C_OUT, ZV // 4, YV, XV)

    ref = reference_forward(stereo_feat, stereo_feat_softmax, cur_sem_feats,
                            cam2img, coordinates_3d, conv_w, gamma, beta)
    ref = jax.block_until_ready(ref)
    max_diff = float(jnp.max(jnp.abs(out - ref)))
    # bf16 MXU operands (f32 accumulation) vs a full-f32 reference
    assert max_diff < 5e-2, f"mismatch vs reference: {max_diff}"
    print("KERNEL_OK")
</pallas_src>

<mosaic_0001>
module attributes {stable_mosaic.version = 11 : i64} {
  func.func @_roll_probe_kernel(%arg0: memref<8x128xf32, #tpu.memory_space<vmem>>, %arg1: memref<8x128xf32, #tpu.memory_space<vmem>>) attributes {dimension_semantics = [], scalar_prefetch = 0 : i64, scratch_operands = 0 : i64, tpu.core_type = #tpu.core_type<tc>} {
    %c0 = arith.constant 0 : index
    %c0_0 = arith.constant 0 : index
    %0 = vector.load %arg0[%c0, %c0_0] : memref<8x128xf32, #tpu.memory_space<vmem>>, vector<8x128xf32>
    %c1_i32 = arith.constant 1 : i32
    %1 = tpu.dynamic_rotate %0 by %c1_i32 dim 1 : vector<8x128xf32>, i32 -> vector<8x128xf32>
    %c0_1 = arith.constant 0 : index
    %c0_2 = arith.constant 0 : index
    %2 = vector.load %arg1[%c0_1, %c0_2] : memref<8x128xf32, #tpu.memory_space<vmem>>, vector<8x128xf32>
    tpu.vector_store %arg1[%c0_1, %c0_2], %1 {strides = array<i32>} : memref<8x128xf32, #tpu.memory_space<vmem>>, vector<8x128xf32>,
    return
  }
}

</mosaic_0001>

<llo_original>
// kernel: tpu_custom_call.1
$region0: #{tpu_custom_call.1}
  #allocation0 [shape = 'u32[]', space=smem, size = 0x4, offset = 0x4, fixed_abs, tag = 'smem constant byte address 0x4 - core index']
  #allocation1 [shape = 'u32[144,128]{1,0:T(1,128)}', space=vmem, size = 0x12000, scoped, tag = 'internal scratch']
  %s0 = inlined_call_operand.hbm [shape: f32[8,128], index: 0, kind: input, shape index: {}]
  %s1 = inlined_call_operand.hbm [shape: f32[8,128], index: 1, kind: output, shape index: {}]
  %s2 = sld [smem:[#allocation0]]
  $region18: #{tpu_custom_call.1} parent=0
    _
  %s4 = ssub.s32 1, %s2
  %s5 = scalar_select 0, %s4, %s2
  $region1: #{tpu_custom_call.1} parent=0
    #allocation2 [shape = 'u8[4096]{0}', space=vmem, size = 0x1000, scoped, tag = 'input window, operand 0, single buffered']
    #allocation3 [shape = 's32[1]{0}', space=sflag, size = 0x4, scoped, tag = 'scoped memory for tpu_custom_call.1']
    #allocation4 [shape = 's32[1]{0}', space=sflag, size = 0x4, scoped, tag = 'scoped memory for tpu_custom_call.1']
    #allocation5 [shape = 'u8[4096]{0}', space=vmem, size = 0x1000, scoped, tag = 'output window, operand 0, single buffered']
    %6 = vsyncpa [#allocation3], 0
    %7 = vsyncpa [#allocation4], 0
    // Predicated region
    $region2: #{tpu_custom_call.1} parent=1 // pred_check
      _
    $region3: #{tpu_custom_call.1} parent=1 // pred_check_branch
      %9 = sbr.rel (0) target = $region5
    $region4: #{tpu_custom_call.1} parent=1 // pred_region
      %s11 = ssub.s32 128, 128
      %12 = vsyncadd [#allocation3], %s11
      %s14 = sshll.u32 [#allocation2], 4
      %s15 = int_to_ptr.vmem [resolvable:$true] %s14
      %17 = dma.hbm_to_vmem [thread:$0]  %s0, 128, %s15, [#allocation3]
    $region5: #{tpu_custom_call.1} parent=1 // pred_fallthru
      _
    // Predicated region
    $region6: #{tpu_custom_call.1} parent=1 // pred_check
      _
    $region7: #{tpu_custom_call.1} parent=1 // pred_check_branch
      %19 = sbr.rel (0) target = $region9
    $region8: #{tpu_custom_call.1} parent=1 // pred_region
      %20 = dma.done [#allocation3], 128
    $region9: #{tpu_custom_call.1} parent=1 // pred_fallthru
      _
    %v21 = vld [vmem:[#allocation2] sm:$0xff]
    %22 = vrot.lane.b32.xlu0 %v21, 1
    %v23 = vpop.permute.xlu0 %22
    %24 = vst [vmem:[#allocation5] sm:$0xff] %v23
    // Predicated region
    $region10: #{tpu_custom_call.1} parent=1 // pred_check
      _
    $region11: #{tpu_custom_call.1} parent=1 // pred_check_branch
      %26 = sbr.rel (0) target = $region13
    $region12: #{tpu_custom_call.1} parent=1 // pred_region
      %s28 = ssub.s32 128, 128
      %29 = vsyncadd [#allocation4], %s28
      %s31 = sshll.u32 [#allocation5], 4
      %s32 = int_to_ptr.vmem [resolvable:$true] %s31
      %34 = dma.vmem_to_hbm [thread:$0]  %s32, 128, %s1, [#allocation4]
    $region13: #{tpu_custom_call.1} parent=1 // pred_fallthru
      _
    // Predicated region
    $region14: #{tpu_custom_call.1} parent=1 // pred_check
      _
    $region15: #{tpu_custom_call.1} parent=1 // pred_check_branch
      %36 = sbr.rel (0) target = $region17
    $region16: #{tpu_custom_call.1} parent=1 // pred_region
      %37 = dma.done [#allocation4], 128
    $region17: #{tpu_custom_call.1} parent=1 // pred_fallthru
      _
    %38 = vsyncpa [#allocation3], 1
    %39 = vsyncpa [#allocation4], 1

</llo_original>
